<compile_context>
chip_gen: v7x
topology: tpu7x:2x2x1
jax: 0.10.0
libtpu: 0.0.40
codegen_flags: <defaults>
</compile_context>

<pallas_src>
import jax
import jax.numpy as jnp
import numpy as np
from jax.experimental import pallas as pl
from jax.experimental.pallas import tpu as pltpu

_LANE = 128
_CD_CHUNK = 2048        # lanes per CD chunk: caps the (TB, TN) f32 intermediate
_MAX_BATCH_TILE = 512   # rows per batch tile: ~85% of HBM roofline, VMEM friendly


def _round_up(x, m):
    return ((x + m - 1) // m) * m


def _cdiv(a, b):
    return (a + b - 1) // b


def convkb_kernel(x_ref, w_ref, cb_ref, fw_ref, fb_ref, out_ref, s_acc):
    j = pl.program_id(1)

    @pl.when(j == 0)
    def _init():
        s_acc[...] = jnp.zeros_like(s_acc)

    # Conv2d-as-matmul on the MXU: bf16 inputs, f32 accumulate.
    a = jnp.dot(x_ref[...], w_ref[...], preferred_element_type=jnp.float32)
    # conv bias + ReLU (Dropout is identity in eval mode).
    h = jnp.maximum(a + cb_ref[...].astype(jnp.float32), 0.0)
    # fc_layer partial sum over this CD chunk: lane reduce into f32 accumulator.
    s_acc[...] += jnp.sum(h * fw_ref[...].astype(jnp.float32),
                          axis=1, keepdims=True)

    @pl.when(j == pl.num_programs(1) - 1)
    def _finalize():
        out_ref[...] = (s_acc[...] + fb_ref[0, 0]).astype(out_ref.dtype)


def convkb_prepare_params(conv_w, conv_b, fc_w, fc_b):
    """Build the structured matmul weights ONCE (outside the per-call path).

    conv_w: (C,1,1,L)  conv_b: (C,)  fc_w: (1, C*D)  fc_b: (1,)
    Returns bf16 (W, cb, fw) padded to a CD-chunk multiple, and f32 fb (1,1).
    """
    C, _, _, L = conv_w.shape
    CD = fc_w.shape[1]
    D = CD // C
    LD = L * D

    cw = conv_w.reshape(C, L).astype(jnp.float32)
    # Structured conv weight: W[l*D+d, c*D+e] = cw[c, l] * (d == e)   (L*D, C*D)
    W = jnp.einsum('cl,de->ldce', cw,
                   jnp.eye(D, dtype=jnp.float32)).reshape(LD, CD)
    cb = jnp.repeat(conv_b.astype(jnp.float32), D)[None, :]       # (1, C*D) C-major
    fw = fc_w.reshape(1, CD).astype(jnp.float32)                  # already C-major

    # Pad the CD axis with zeros to a chunk multiple: padded columns give
    # ReLU(0 + 0) * 0 = 0, so they contribute nothing to the score.
    TN = min(_CD_CHUNK, _round_up(CD, _LANE))
    CD_pad = _round_up(CD, TN)
    if CD_pad != CD:
        W = jnp.pad(W, ((0, 0), (0, CD_pad - CD)))
        cb = jnp.pad(cb, ((0, 0), (0, CD_pad - CD)))
        fw = jnp.pad(fw, ((0, 0), (0, CD_pad - CD)))

    return (W.astype(jnp.bfloat16), cb.astype(jnp.bfloat16),
            fw.astype(jnp.bfloat16), fc_b.reshape(1, 1).astype(jnp.float32))


@jax.jit
def convkb_forward(x, W, cb, fw, fb):
    """x: (B, L, D); (W, cb, fw, fb) from convkb_prepare_params. Returns (B, 1)."""
    B, L, D = x.shape
    LD = L * D
    CD_pad = W.shape[1]
    assert W.shape[0] == LD
    TN = CD_pad if CD_pad <= _CD_CHUNK else _CD_CHUNK
    assert CD_pad % TN == 0
    nj = CD_pad // TN

    # Lane-dense, bf16 streamed input.
    x2 = x.reshape(B, LD).astype(jnp.bfloat16)

    # Balanced batch tiles; >=2 grid steps when B allows it (v7x megacore).
    num_tiles = max(_cdiv(B, _MAX_BATCH_TILE), 2 if B > 16 else 1)
    TB = _round_up(_cdiv(B, num_tiles), 16)       # 16: bf16 sublane packing
    num_tiles = _cdiv(B, TB)
    B_pad = num_tiles * TB
    if B_pad != B:
        # Padded rows produce finite garbage scores that are sliced off below.
        x2 = jnp.pad(x2, ((0, B_pad - B), (0, 0)))

    w_passes = num_tiles if nj > 1 else 1
    cost = pl.CostEstimate(
        flops=2 * B_pad * LD * CD_pad + 3 * B_pad * CD_pad,
        transcendentals=0,
        bytes_accessed=(x2.size * 2 + W.size * 2 * w_passes
                        + (cb.size + fw.size) * 2 + B_pad * 4),
    )

    out = pl.pallas_call(
        convkb_kernel,
        out_shape=jax.ShapeDtypeStruct((B_pad, 1), jnp.float32),
        grid_spec=pltpu.PrefetchScalarGridSpec(
            num_scalar_prefetch=0,
            grid=(num_tiles, nj),                 # batch (parallel) x CD (arbitrary)
            in_specs=[
                pl.BlockSpec((TB, LD), lambda i, j: (i, 0)),   # x: streamed per tile
                pl.BlockSpec((LD, TN), lambda i, j: (0, j)),   # W: per CD chunk
                pl.BlockSpec((1, TN), lambda i, j: (0, j)),    # conv bias (expanded)
                pl.BlockSpec((1, TN), lambda i, j: (0, j)),    # fc weight
                pl.BlockSpec(memory_space=pltpu.MemorySpace.SMEM),  # fc bias scalar
            ],
            out_specs=pl.BlockSpec((TB, 1), lambda i, j: (i, 0)),
            scratch_shapes=[pltpu.VMEM((TB, 1), jnp.float32)],  # fc partial sums
        ),
        compiler_params=pltpu.CompilerParams(
            dimension_semantics=("parallel", "arbitrary"),
            vmem_limit_bytes=48 * 1024 * 1024),
        cost_estimate=cost,
    )(x2, W, cb, fw, fb)

    return out[:B]


def convkb_reference(x, conv_w, conv_b, fc_w, fc_b):
    """Literal re-implementation of the PyTorch forward (eval mode) in plain JAX."""
    B, L, D = x.shape
    xt = jnp.transpose(x, (0, 2, 1))[:, None, :, :]            # (B, 1, D, L) NCHW
    out = jax.lax.conv_general_dilated(
        xt, conv_w, window_strides=(1, 1), padding="VALID",
        dimension_numbers=("NCHW", "OIHW", "NCHW"),
        precision=jax.lax.Precision.HIGHEST)                   # (B, C, D, 1)
    out = out + conv_b[None, :, None, None]
    h = jnp.maximum(out, 0.0)
    flat = h[..., 0].reshape(B, -1)                            # (B, C*D), C-major
    return jnp.dot(flat, fc_w.T,
                   precision=jax.lax.Precision.HIGHEST) + fc_b[None, :]


def xavier_uniform(key, shape, fan_in, fan_out, gain):
    bound = gain * np.sqrt(6.0 / (fan_in + fan_out))
    return jax.random.uniform(key, shape, jnp.float32, -bound, bound)


if __name__ == "__main__":
    # Small, module-consistent shapes.
    B = 2            # batch
    L = 8            # input_seq_len (== conv kernel width, NCHW W dim)
    D = 32           # input_dim (embedding dim, NCHW H dim)
    C = 4            # out_channels
    gain = 1.414

    key = jax.random.PRNGKey(0)
    kx, kcw, kcb, kfw, kfb = jax.random.split(key, 5)

    x = jax.random.normal(kx, (B, L, D), jnp.float32)

    # Conv2d(1, C, kernel_size=(1, L)) weight: (C, 1, 1, L), xavier_uniform gain=1.414
    conv_w = xavier_uniform(kcw, (C, 1, 1, L), fan_in=1 * 1 * L, fan_out=C * 1 * L, gain=gain)
    conv_b = jax.random.uniform(kcb, (C,), jnp.float32, -0.1, 0.1)

    # Linear(D*C, 1) weight: (1, C*D), xavier_uniform gain=1.414
    fc_w = xavier_uniform(kfw, (1, C * D), fan_in=C * D, fan_out=1, gain=gain)
    fc_b = jax.random.uniform(kfb, (1,), jnp.float32, -0.1, 0.1)

    params = convkb_prepare_params(conv_w, conv_b, fc_w, fc_b)
    out = convkb_forward(x, *params)
    out = jax.block_until_ready(out)
    assert out.shape == (B, 1)

    # Strict check vs a reference with the SAME bf16 input/weight quantization
    # (only f32 summation-order differences remain).
    bq = lambda a: a.astype(jnp.bfloat16).astype(jnp.float32)
    ref_bf16 = convkb_reference(bq(x), bq(conv_w), bq(conv_b), bq(fc_w), fc_b)
    np.testing.assert_allclose(np.asarray(out), np.asarray(ref_bf16),
                               rtol=1e-3, atol=1e-3)

    # Looser check vs the full-f32 PyTorch-faithful reference (bf16 streaming).
    ref_f32 = convkb_reference(x, conv_w, conv_b, fc_w, fc_b)
    np.testing.assert_allclose(np.asarray(out), np.asarray(ref_f32),
                               rtol=2e-2, atol=2e-2)

    print("KERNEL_OK")
</pallas_src>

<mosaic_0001>
module attributes {stable_mosaic.version = 11 : i64} {
  func.func @convkb_kernel(%arg0: i32, %arg1: i32, %arg2: memref<16x256xbf16, #tpu.memory_space<vmem>>, %arg3: memref<256x128xbf16, #tpu.memory_space<vmem>>, %arg4: memref<1x128xbf16, #tpu.memory_space<vmem>>, %arg5: memref<1x128xbf16, #tpu.memory_space<vmem>>, %arg6: memref<1x1xf32, #tpu.memory_space<smem>>, %arg7: memref<16x1xf32, #tpu.memory_space<vmem>>, %arg8: memref<16x1xf32, #tpu.memory_space<vmem>>) attributes {dimension_semantics = [#tpu.dimension_semantics<parallel>, #tpu.dimension_semantics<arbitrary>], iteration_bounds = array<i64: 1, 1>, scalar_prefetch = 0 : i64, scratch_operands = 1 : i64, tpu.core_type = #tpu.core_type<tc>, window_params = [{transform_indices = @transform_0, window_bounds = array<i64: 16, 256>}, {transform_indices = @transform_1, window_bounds = array<i64: 256, 128>}, {transform_indices = @transform_2, window_bounds = array<i64: 1, 128>}, {transform_indices = @transform_3, window_bounds = array<i64: 1, 128>}, {transform_indices = @transform_4, window_bounds = array<i64: 1, 1>}, {transform_indices = @transform_5, window_bounds = array<i64: 16, 1>}]} {
    %c0_i32 = arith.constant 0 : i32
    %0 = arith.cmpi eq, %arg1, %c0_i32 : i32
    %1 = arith.extui %0 : i1 to i32
    %c0_i32_0 = arith.constant 0 : i32
    %2 = arith.cmpi ne, %1, %c0_i32_0 : i32
    scf.if %2 {
      %cst_16 = arith.constant 0.000000e+00 : f32
      %24 = vector.broadcast %cst_16 : f32 to vector<16x1xf32>
      %c0_17 = arith.constant 0 : index
      %c0_18 = arith.constant 0 : index
      %25 = vector.load %arg8[%c0_17, %c0_18] : memref<16x1xf32, #tpu.memory_space<vmem>>, vector<16x1xf32>
      tpu.vector_store %arg8[%c0_17, %c0_18], %24 {strides = array<i32>} : memref<16x1xf32, #tpu.memory_space<vmem>>, vector<16x1xf32>,
    } else {
    }
    %c0 = arith.constant 0 : index
    %c0_1 = arith.constant 0 : index
    %3 = vector.load %arg2[%c0, %c0_1] : memref<16x256xbf16, #tpu.memory_space<vmem>>, vector<16x256xbf16>
    %c0_2 = arith.constant 0 : index
    %c0_3 = arith.constant 0 : index
    %4 = vector.load %arg3[%c0_2, %c0_3] : memref<256x128xbf16, #tpu.memory_space<vmem>>, vector<256x128xbf16>
    %cst = arith.constant dense<0.000000e+00> : vector<16x128xf32>
    %5 = tpu.matmul %3, %4, %cst {dimension_numbers = #tpu.dot_dimension_numbers<[1], [0], [0], [1], [0, 0, 1, 1], [], []>} : vector<16x256xbf16>, vector<256x128xbf16>, vector<16x128xf32> -> vector<16x128xf32>
    %c0_4 = arith.constant 0 : index
    %c0_5 = arith.constant 0 : index
    %6 = vector.load %arg4[%c0_4, %c0_5] : memref<1x128xbf16, #tpu.memory_space<vmem>>, vector<1x128xbf16>
    %7 = arith.extf %6 : vector<1x128xbf16> to vector<1x128xf32>
    %8 = vector.broadcast %7 : vector<1x128xf32> to vector<16x128xf32>
    %9 = arith.addf %5, %8 : vector<16x128xf32>
    %cst_6 = arith.constant 0.000000e+00 : f32
    %10 = vector.broadcast %cst_6 : f32 to vector<16x128xf32>
    %11 = arith.maximumf %9, %10 : vector<16x128xf32>
    %c0_7 = arith.constant 0 : index
    %c0_8 = arith.constant 0 : index
    %12 = vector.load %arg8[%c0_7, %c0_8] : memref<16x1xf32, #tpu.memory_space<vmem>>, vector<16x1xf32>
    %c0_9 = arith.constant 0 : index
    %c0_10 = arith.constant 0 : index
    %13 = vector.load %arg5[%c0_9, %c0_10] : memref<1x128xbf16, #tpu.memory_space<vmem>>, vector<1x128xbf16>
    %14 = arith.extf %13 : vector<1x128xbf16> to vector<1x128xf32>
    %15 = vector.broadcast %14 : vector<1x128xf32> to vector<16x128xf32>
    %16 = arith.mulf %11, %15 : vector<16x128xf32>
    %cst_11 = arith.constant dense<0.000000e+00> : vector<16xf32>
    %17 = vector.multi_reduction <add>, %16, %cst_11 [1] : vector<16x128xf32> to vector<16xf32>
    %18 = vector.shape_cast %17 : vector<16xf32> to vector<16x1xf32>
    %19 = arith.addf %12, %18 : vector<16x1xf32>
    %c0_12 = arith.constant 0 : index
    %c0_13 = arith.constant 0 : index
    %20 = vector.load %arg8[%c0_12, %c0_13] : memref<16x1xf32, #tpu.memory_space<vmem>>, vector<16x1xf32>
    tpu.vector_store %arg8[%c0_12, %c0_13], %19 {strides = array<i32>} : memref<16x1xf32, #tpu.memory_space<vmem>>, vector<16x1xf32>,
    %c0_i32_14 = arith.constant 0 : i32
    %21 = arith.cmpi eq, %arg1, %c0_i32_14 : i32
    %22 = arith.extui %21 : i1 to i32
    %c0_i32_15 = arith.constant 0 : i32
    %23 = arith.cmpi ne, %22, %c0_i32_15 : i32
    scf.if %23 {
      %c0_16 = arith.constant 0 : index
      %c0_17 = arith.constant 0 : index
      %24 = vector.load %arg8[%c0_16, %c0_17] : memref<16x1xf32, #tpu.memory_space<vmem>>, vector<16x1xf32>
      %c0_18 = arith.constant 0 : index
      %c0_19 = arith.constant 0 : index
      %25 = memref.load %arg6[%c0_18, %c0_19] : memref<1x1xf32, #tpu.memory_space<smem>>
      %26 = vector.broadcast %25 : f32 to vector<16x1xf32>
      %27 = arith.addf %24, %26 : vector<16x1xf32>
      %c0_20 = arith.constant 0 : index
      %c0_21 = arith.constant 0 : index
      %28 = vector.load %arg7[%c0_20, %c0_21] : memref<16x1xf32, #tpu.memory_space<vmem>>, vector<16x1xf32>
      tpu.vector_store %arg7[%c0_20, %c0_21], %27 {strides = array<i32>} : memref<16x1xf32, #tpu.memory_space<vmem>>, vector<16x1xf32>,
    } else {
    }
    return
  }
  func.func @transform_0(%arg0: i32, %arg1: i32) -> (i32, i32) {
    %c0_i32 = arith.constant 0 : i32
    %c0_i32_0 = arith.constant 0 : i32
    return %arg0, %c0_i32 : i32, i32
  }
  func.func @transform_1(%arg0: i32, %arg1: i32) -> (i32, i32) {
    %c0_i32 = arith.constant 0 : i32
    %c0_i32_0 = arith.constant 0 : i32
    return %c0_i32, %arg1 : i32, i32
  }
  func.func @transform_2(%arg0: i32, %arg1: i32) -> (i32, i32) {
    %c0_i32 = arith.constant 0 : i32
    %c0_i32_0 = arith.constant 0 : i32
    return %c0_i32, %arg1 : i32, i32
  }
  func.func @transform_3(%arg0: i32, %arg1: i32) -> (i32, i32) {
    %c0_i32 = arith.constant 0 : i32
    %c0_i32_0 = arith.constant 0 : i32
    return %c0_i32, %arg1 : i32, i32
  }
  func.func @transform_4(%arg0: i32, %arg1: i32) -> (i32, i32) {
    %c0_i32 = arith.constant 0 : i32
    %c0_i32_0 = arith.constant 0 : i32
    %c0_i32_1 = arith.constant 0 : i32
    return %c0_i32, %c0_i32_0 : i32, i32
  }
  func.func @transform_5(%arg0: i32, %arg1: i32) -> (i32, i32) {
    %c0_i32 = arith.constant 0 : i32
    %c0_i32_0 = arith.constant 0 : i32
    return %arg0, %c0_i32 : i32, i32
  }
}

</mosaic_0001>

<llo_original>
// kernel: convkb_forward.1
$region0: #{convkb_forward.1}
  #allocation0 [shape = 'u32[]', space=smem, size = 0x4, offset = 0x4, fixed_abs, tag = 'smem constant byte address 0x4 - core index']
  #allocation1 [shape = 'u32[144,128]{1,0:T(1,128)}', space=vmem, size = 0x12000, scoped, tag = 'internal scratch']
  #allocation2 [shape = 'f32[16,1]{1,0:T(8,128)}', space=vmem, size = 0x2000, scoped, tag = 'scratch operand']
  #allocation3 [shape = 'f32[1,1]{1,0:T(1,128)S(6)}', space=smem, size = 0x200, scoped, tag = 'scoped memory for convkb_forward.1']
  %s0 = inlined_call_operand.vmem [shape: bf16[16,256], index: 0, kind: input, shape index: {}]
  %s1 = inlined_call_operand.hbm [shape: bf16[256,128], index: 1, kind: input, shape index: {}]
  %s2 = inlined_call_operand.vmem [shape: bf16[1,128], index: 2, kind: input, shape index: {}]
  %s3 = inlined_call_operand.vmem [shape: bf16[1,128], index: 3, kind: input, shape index: {}]
  %s4 = inlined_call_operand.<no memory space> [shape: f32[1,1], index: 4, kind: input, shape index: {}]
  %s5 = inlined_call_operand.vmem [shape: f32[16,1], index: 5, kind: output, shape index: {}]
  %s6 = sld [smem:[#allocation0]]
  $region42: #{convkb_forward.1} parent=0
    _
  %s8 = ssub.s32 1, %s6
  %s9 = scalar_select 0, %s8, %s6
  %10 = sst [smem:[#allocation3]] %s4
  $region1: #{convkb_forward.1} parent=0
    #allocation4 [shape = 'u8[65536]{0}', space=vmem, size = 0x10000, scoped, tag = 'input window, operand 1, single buffered']
    #allocation5 [shape = 's32[1]{0}', space=sflag, size = 0x4, scoped, tag = 'scoped memory for convkb_forward.1']
    %11 = vsyncpa [#allocation5], 0
    // Predicated region
    $region2: #{convkb_forward.1} parent=1 // pred_check
      _
    $region3: #{convkb_forward.1} parent=1 // pred_check_branch
      %13 = sbr.rel (0) target = $region5
    $region4: #{convkb_forward.1} parent=1 // pred_region
      _
    $region5: #{convkb_forward.1} parent=1 // pred_fallthru
      _
    // Predicated region
    $region6: #{convkb_forward.1} parent=1 // pred_check
      _
    $region7: #{convkb_forward.1} parent=1 // pred_check_branch
      %15 = sbr.rel (0) target = $region9
    $region8: #{convkb_forward.1} parent=1 // pred_region
      %s17 = ssub.s32 2048, 2048
      %18 = vsyncadd [#allocation5], %s17
      %s19 = sshll.u32 [#allocation4], 4
      %s20 = int_to_ptr.vmem [resolvable:$true] %s19
      %25 = dma.hbm_to_vmem [thread:$0]  %s1, 2048, %s20, [#allocation5], 64, 64, 4
    $region9: #{convkb_forward.1} parent=1 // pred_fallthru
      _
    // Predicated region
    $region10: #{convkb_forward.1} parent=1 // pred_check
      _
    $region11: #{convkb_forward.1} parent=1 // pred_check_branch
      %27 = sbr.rel (0) target = $region13
    $region12: #{convkb_forward.1} parent=1 // pred_region
      _
    $region13: #{convkb_forward.1} parent=1 // pred_fallthru
      _
    // Predicated region
    $region14: #{convkb_forward.1} parent=1 // pred_check
      _
    $region15: #{convkb_forward.1} parent=1 // pred_check_branch
      %29 = sbr.rel (0) target = $region17
    $region16: #{convkb_forward.1} parent=1 // pred_region
      _
    $region17: #{convkb_forward.1} parent=1 // pred_fallthru
      _
    // Predicated region
    $region18: #{convkb_forward.1} parent=1 // pred_check
      _
    $region19: #{convkb_forward.1} parent=1 // pred_check_branch
      %31 = sbr.rel (0) target = $region21
    $region20: #{convkb_forward.1} parent=1 // pred_region
      _
    $region21: #{convkb_forward.1} parent=1 // pred_fallthru
      _
    // Predicated region
    $region22: #{convkb_forward.1} parent=1 // pred_check
      _
    $region23: #{convkb_forward.1} parent=1 // pred_check_branch
      %33 = sbr.rel (0) target = $region25
    $region24: #{convkb_forward.1} parent=1 // pred_region
      %34 = dma.done [#allocation5], 2048
    $region25: #{convkb_forward.1} parent=1 // pred_fallthru
      _
    %p36 = scmp.eq.s32.totalorder 0, 0
    // Predicated region
    $region26: #{convkb_forward.1} parent=1 // pred_check
      %p37 = pneg %p36
    $region27: #{convkb_forward.1} parent=1 // pred_check_branch
      %39 = sbr.rel (%p37) target = $region29
    $region28: #{convkb_forward.1} parent=1 // pred_region
      %vm40 = vcmask 7168
      %41 = vst.msk [vmem:[#allocation2] sm:$0xff] %vm40, 0.0
      %42 = vst.msk [vmem:[#allocation2 + $0x8] sm:$0xff] %vm40, 0.0
    $region29: #{convkb_forward.1} parent=1 // pred_fallthru
      _
    %v43 = vld [vmem:[%s0] sm:$0xff]
    %v44 = vld [vmem:[%s0 + $0x8] sm:$0xff]
    %v45 = vld [vmem:[#allocation4] sm:$0xf]
    %v46 = vld [vmem:[#allocation4 + $0x4] sm:$0xf]
    %v47 = vld [vmem:[#allocation4 + $0x8] sm:$0xf]
    %v48 = vld [vmem:[#allocation4 + $0xc] sm:$0xf]
    %v49 = vld [vmem:[#allocation4 + $0x10] sm:$0xf]
    %v50 = vld [vmem:[#allocation4 + $0x14] sm:$0xf]
    %v51 = vld [vmem:[#allocation4 + $0x18] sm:$0xf]
    %v52 = vld [vmem:[#allocation4 + $0x1c] sm:$0xf]
    %v53 = vld [vmem:[#allocation4 + $0x20] sm:$0xf]
    %v54 = vld [vmem:[#allocation4 + $0x24] sm:$0xf]
    %v55 = vld [vmem:[#allocation4 + $0x28] sm:$0xf]
    %v56 = vld [vmem:[#allocation4 + $0x2c] sm:$0xf]
    %v57 = vld [vmem:[#allocation4 + $0x30] sm:$0xf]
    %v58 = vld [vmem:[#allocation4 + $0x34] sm:$0xf]
    %v59 = vld [vmem:[#allocation4 + $0x38] sm:$0xf]
    %v60 = vld [vmem:[#allocation4 + $0x3c] sm:$0xf]
    %v61 = vld [vmem:[#allocation4 + $0x40] sm:$0xf]
    %v62 = vld [vmem:[#allocation4 + $0x44] sm:$0xf]
    %v63 = vld [vmem:[#allocation4 + $0x48] sm:$0xf]
    %v64 = vld [vmem:[#allocation4 + $0x4c] sm:$0xf]
    %v65 = vld [vmem:[#allocation4 + $0x50] sm:$0xf]
    %v66 = vld [vmem:[#allocation4 + $0x54] sm:$0xf]
    %v67 = vld [vmem:[#allocation4 + $0x58] sm:$0xf]
    %v68 = vld [vmem:[#allocation4 + $0x5c] sm:$0xf]
    %v69 = vld [vmem:[#allocation4 + $0x60] sm:$0xf]
    %v70 = vld [vmem:[#allocation4 + $0x64] sm:$0xf]
    %v71 = vld [vmem:[#allocation4 + $0x68] sm:$0xf]
    %v72 = vld [vmem:[#allocation4 + $0x6c] sm:$0xf]
    %v73 = vld [vmem:[#allocation4 + $0x70] sm:$0xf]
    %v74 = vld [vmem:[#allocation4 + $0x74] sm:$0xf]
    %v75 = vld [vmem:[#allocation4 + $0x78] sm:$0xf]
    %v76 = vld [vmem:[#allocation4 + $0x7c] sm:$0xf]
    %v77 = vld [vmem:[%s2] sm:$0x1]
    %v78 = vunpack.c.l.bf16 %v77
    %v79 = vlaneseq
    %v80 = vshrl.u32 %v79, 7
    %v81 = vsub.s32 0, %v80
    %v82 = vrot.slane %v78, %v81
    %v85 = vunpack.c.l.b16 %v43
    %v86 = vunpack.c.h.b16 %v43
    %v87 = vunpack.c.l.b16 %v44
    %v88 = vunpack.c.h.b16 %v44
    %v89 = vpack.c.b16 %v87, %v85
    %v90 = vpack.c.b16 %v88, %v86
    %v125 = vunpack.c.l.b16 %v45
    %v126 = vunpack.c.l.b16 %v46
    %v127 = vunpack.c.l.b16 %v47
    %v128 = vunpack.c.l.b16 %v48
    %v129 = vunpack.c.l.b16 %v49
    %v130 = vunpack.c.l.b16 %v50
    %v131 = vunpack.c.l.b16 %v51
    %v132 = vunpack.c.l.b16 %v52
    %v133 = vunpack.c.l.b16 %v53
    %v134 = vunpack.c.l.b16 %v54
    %v135 = vunpack.c.l.b16 %v55
    %v136 = vunpack.c.l.b16 %v56
    %v137 = vunpack.c.l.b16 %v57
    %v138 = vunpack.c.l.b16 %v58
    %v139 = vunpack.c.l.b16 %v59
    %v140 = vunpack.c.l.b16 %v60
    %v141 = vunpack.c.l.b16 %v61
    %v142 = vunpack.c.l.b16 %v62
    %v143 = vunpack.c.l.b16 %v63
    %v144 = vunpack.c.l.b16 %v64
    %v145 = vunpack.c.l.b16 %v65
    %v146 = vunpack.c.l.b16 %v66
    %v147 = vunpack.c.l.b16 %v67
    %v148 = vunpack.c.l.b16 %v68
    %v149 = vunpack.c.l.b16 %v69
    %v150 = vunpack.c.l.b16 %v70
    %v151 = vunpack.c.l.b16 %v71
    %v152 = vunpack.c.l.b16 %v72
    %v153 = vunpack.c.l.b16 %v73
    %v154 = vunpack.c.l.b16 %v74
    %v155 = vunpack.c.l.b16 %v75
    %v156 = vunpack.c.l.b16 %v76
    %v157 = vpack.c.b16 %v126, %v125
    %v158 = vpack.c.b16 %v128, %v127
    %v159 = vpack.c.b16 %v130, %v129
    %v160 = vpack.c.b16 %v132, %v131
    %v161 = vpack.c.b16 %v134, %v133
    %v162 = vpack.c.b16 %v136, %v135
    %v163 = vpack.c.b16 %v138, %v137
    %v164 = vpack.c.b16 %v140, %v139
    %v165 = vpack.c.b16 %v142, %v141
    %v166 = vpack.c.b16 %v144, %v143
    %v167 = vpack.c.b16 %v146, %v145
    %v168 = vpack.c.b16 %v148, %v147
    %v169 = vpack.c.b16 %v150, %v149
    %v170 = vpack.c.b16 %v152, %v151
    %v171 = vpack.c.b16 %v154, %v153
    %v172 = vpack.c.b16 %v156, %v155
    %189 = vmatprep.subr.bf16.mxu0 0
    %190 = vmatpush1.bf16.msra.mxu0 %v157
    %191 = vmatprep.subr.bf16.mxu0 0
    %192 = vmatpush1.bf16.msra.mxu0 %v158
    %193 = vmatprep.subr.bf16.mxu0 0
    %194 = vmatpush1.bf16.msra.mxu0 %v159
    %195 = vmatprep.subr.bf16.mxu0 0
    %196 = vmatpush1.bf16.msra.mxu0 %v160
    %197 = vmatprep.subr.bf16.mxu0 0
    %198 = vmatpush1.bf16.msra.mxu0 %v161
    %199 = vmatprep.subr.bf16.mxu0 0
    %200 = vmatpush1.bf16.msra.mxu0 %v162
    %201 = vmatprep.subr.bf16.mxu0 0
    %202 = vmatpush1.bf16.msra.mxu0 %v163
    %203 = vmatprep.subr.bf16.mxu0 0
    %204 = vmatpush1.bf16.msra.mxu0 %v164
    %205 = vmatprep.subr.bf16.mxu0 0
    %206 = vmatpush1.bf16.msra.mxu0 %v165
    %207 = vmatprep.subr.bf16.mxu0 0
    %208 = vmatpush1.bf16.msra.mxu0 %v166
    %209 = vmatprep.subr.bf16.mxu0 0
    %210 = vmatpush1.bf16.msra.mxu0 %v167
    %211 = vmatprep.subr.bf16.mxu0 0
    %212 = vmatpush1.bf16.msra.mxu0 %v168
    %213 = vmatprep.subr.bf16.mxu0 0
    %214 = vmatpush1.bf16.msra.mxu0 %v169
    %215 = vmatprep.subr.bf16.mxu0 0
    %216 = vmatpush1.bf16.msra.mxu0 %v170
    %217 = vmatprep.subr.bf16.mxu0 0
    %218 = vmatpush1.bf16.msra.mxu0 %v171
    %219 = vmatprep.subr.bf16.mxu0 0
    %220 = vmatpush1.bf16.msra.mxu0 %v172
    %221 = vmatprep.mubr.bf16.mxu0 %v90
    %222 = vmatmul.mubr.bf16.gmra.mrb[0].mxu0 %v89
    %v223 = vpop.f32.mrb[0].mxu0
    %v224 = vadd.f32 %v82, %v223
    %v225 = vpop.f32.mrb[0].mxu0
    %v226 = vpop.f32.mrb[0].mxu0
    %v227 = vadd.f32 %v82, %v226
    %v228 = vpop.f32.mrb[0].mxu0
    %229 = vdwg.mxu0
    %v230 = vmax.f32 %v224, 0.0
    %v231 = vmax.f32 %v227, 0.0
    %v232 = vld [vmem:[#allocation2] sm:$0xff]
    %v233 = vld [vmem:[#allocation2 + $0x8] sm:$0xff]
    %v234 = vld [vmem:[%s3] sm:$0x1]
    %v235 = vunpack.c.l.bf16 %v234
    %v236 = vlaneseq
    %v237 = vshrl.u32 %v236, 7
    %v238 = vsub.s32 0, %v237
    %v239 = vrot.slane %v235, %v238
    %v240 = vmul.f32 %v230, %v239
    %v241 = vmul.f32 %v231, %v239
    %242 = vadd.xlane.f32.xlu0 %v240
    %v243 = vpop.xlane.xlu0 %242
    %244 = vadd.xlane.f32.xlu0 %v241
    %v245 = vpop.xlane.xlu0 %244
    %v246 = vadd.f32 %v232, %v243
    %v247 = vadd.f32 %v233, %v245
    %vm248 = vcmask 7168
    %249 = vst.msk [vmem:[#allocation2] sm:$0xff] %vm248, %v246
    %250 = vst.msk [vmem:[#allocation2 + $0x8] sm:$0xff] %vm248, %v247
    // Predicated region
    $region30: #{convkb_forward.1} parent=1 // pred_check
      %p251 = pneg %p36
    $region31: #{convkb_forward.1} parent=1 // pred_check_branch
      %253 = sbr.rel (%p251) target = $region33
    $region32: #{convkb_forward.1} parent=1 // pred_region
      %v254 = vld [vmem:[#allocation2] sm:$0xff]
      %v255 = vld [vmem:[#allocation2 + $0x8] sm:$0xff]
      %s256 = sld [smem:[#allocation3]]
      %v257 = vstv %s256
      %v258 = vadd.f32 %v254, %v257
      %v259 = vadd.f32 %v255, %v257
      %260 = vst.msk [vmem:[%s5] sm:$0xff] %vm248, %v258
      %261 = vst.msk [vmem:[%s5 + $0x8] sm:$0xff] %vm248, %v259
    $region33: #{convkb_forward.1} parent=1 // pred_fallthru
      _
    // Predicated region
    $region34: #{convkb_forward.1} parent=1 // pred_check
      _
    $region35: #{convkb_forward.1} parent=1 // pred_check_branch
      %263 = sbr.rel (0) target = $region37
    $region36: #{convkb_forward.1} parent=1 // pred_region
      _
    $region37: #{convkb_forward.1} parent=1 // pred_fallthru
      _
    // Predicated region
    $region38: #{convkb_forward.1} parent=1 // pred_check
      _
    $region39: #{convkb_forward.1} parent=1 // pred_check_branch
      %265 = sbr.rel (0) target = $region41
    $region40: #{convkb_forward.1} parent=1 // pred_region
      _
    $region41: #{convkb_forward.1} parent=1 // pred_fallthru
      _
    %266 = vsyncpa [#allocation5], 1

</llo_original>
